<compile_context>
chip_gen: v5e
topology: v5e:2x2
jax: 0.10.0
libtpu: 0.0.40
codegen_flags: <defaults>
</compile_context>

<pallas_src>
import jax
import jax.numpy as jnp
from jax import lax
from jax.experimental import pallas as pl
from jax.experimental.pallas import tpu as pltpu

_LANES = 128
_CHUNK = 8 * _LANES          # 1024 elements = one full (8,128) f32 vreg tile
_MIN_TILE_ROWS = 256         # >= 128 KiB per f32 input tile (bandwidth floor)
_MAX_TILE_ROWS = 4096        # 2 MiB per f32 input tile; 2 in x 2 buf = 8 MiB VMEM


def _round_up(v, m):
    return -(-v // m) * m


def _tensorcores_per_chip():
    """Best-effort multi-TensorCore detection (v7x = 2 TCs); safe default 1."""
    try:
        kind = jax.devices()[0].device_kind.lower()
    except Exception:
        return 1
    if "v7" in kind or "7x" in kind:
        return 2
    return 1


def _pick_tile_rows(rows, itemsize):
    """Row-tile size: ~8 inner steps, clamped to [256, 4096] rows, packed-aligned."""
    align = max(8, 32 // max(int(itemsize), 1))   # 8 (f32), 16 (bf16), 32 (int8/fp8)
    t = -(-rows // 8)                             # aim for ~8 grid steps
    t = _round_up(t, align)
    t = max(t, _MIN_TILE_ROWS)
    t = min(t, _MAX_TILE_ROWS)
    if t >= rows:
        return rows                               # single block, equals full dim
    return t


def _make_kernel(tile_r, rows, num_tiles, tiles_per_half, split, need_max):
    """Builds the tiled reduction kernel (all sizing static / baked in)."""
    sub = tile_r // 8                             # (8,128) vreg-tiles per input block
    tail_rows = rows - (num_tiles - 1) * tile_r   # valid rows in the last block
    ragged = tail_rows != tile_r
    overshoot = split and (2 * tiles_per_half > num_tiles)

    def _acc(sq, y, sum_ref, max_ref):
        # Vector accumulator: per-vreg partial sums/maxes (pure VPU work);
        # the cross-lane/sublane reduce happens once in the JAX epilogue.
        sum_ref[...] = sum_ref[...] + sq.reshape(sub, 8, _LANES).sum(axis=0)
        if need_max:
            max_ref[...] = jnp.maximum(
                max_ref[...], y.reshape(sub, 8, _LANES).max(axis=0))

    def kernel(x_ref, y_ref, sum_ref, *rest):
        max_ref = rest[0] if need_max else None
        if split:
            p = pl.program_id(0)
            i = pl.program_id(1)
            blk = p * tiles_per_half + i
        else:
            i = pl.program_id(0)
            blk = i

        @pl.when(i == 0)
        def _init():
            sum_ref[...] = jnp.zeros(sum_ref.shape, jnp.float32)
            if need_max:
                max_ref[...] = jnp.full(max_ref.shape, -jnp.inf, jnp.float32)

        x = x_ref[...].astype(jnp.float32)        # in-kernel upcast (bf16 -> f32)
        y = y_ref[...].astype(jnp.float32)
        sq = (x - y) * (x - y)

        if not ragged and not overshoot:
            # Common fast path: no masks, no guards.
            _acc(sq, y, sum_ref, max_ref)
        else:
            full_ok = blk < (num_tiles - 1) if ragged else blk < num_tiles

            @pl.when(full_ok)
            def _full():
                _acc(sq, y, sum_ref, max_ref)

            if ragged:
                @pl.when(blk == num_tiles - 1)
                def _partial():
                    # Only the single last real tile pays mask work.
                    row_ids = lax.broadcasted_iota(jnp.int32, (tile_r, _LANES), 0)
                    valid = row_ids < tail_rows
                    ym = jnp.where(valid, y, -jnp.inf) if need_max else y
                    _acc(jnp.where(valid, sq, 0.0), ym, sum_ref, max_ref)

    return kernel


def _reduce_bulk(x2, y2, rows, need_max, tile_rows=None, split_cores=None):
    """Pallas reduction of the [rows, 128] bulk. Returns (sum_block, [max_block])."""
    if tile_rows is not None:
        tile_r = max(8, (min(int(tile_rows), rows) // 8) * 8)
    else:
        tile_r = _pick_tile_rows(rows, jnp.dtype(x2.dtype).itemsize)

    num_tiles = -(-rows // tile_r)
    cores = split_cores if split_cores is not None else _tensorcores_per_chip()
    use_split = cores >= 2 and num_tiles >= 2

    if use_split:
        tiles_per_half = -(-num_tiles // 2)
        overshoot = 2 * tiles_per_half > num_tiles
        grid = (2, tiles_per_half)
        dims = ("parallel", "arbitrary")

        def in_index_map(p, i):
            blk = p * tiles_per_half + i
            if overshoot:                          # clamp the (guarded) duplicate
                blk = jnp.minimum(blk, num_tiles - 1)
            return (blk, 0)

        out_rows = 16
        out_index_map = lambda p, i: (p, 0)
    else:
        tiles_per_half = num_tiles
        grid = (num_tiles,)
        dims = ("arbitrary",)
        in_index_map = lambda i: (i, 0)
        out_rows = 8
        out_index_map = lambda i: (0, 0)

    kernel = _make_kernel(tile_r, rows, num_tiles, tiles_per_half,
                          use_split, need_max)

    out_shapes = [jax.ShapeDtypeStruct((out_rows, _LANES), jnp.float32)]
    out_specs = [pl.BlockSpec((8, _LANES), out_index_map)]
    if need_max:
        out_shapes.append(jax.ShapeDtypeStruct((out_rows, _LANES), jnp.float32))
        out_specs.append(pl.BlockSpec((8, _LANES), out_index_map))

    return pl.pallas_call(
        kernel,
        out_shape=tuple(out_shapes),
        grid=grid,
        in_specs=[
            pl.BlockSpec((tile_r, _LANES), in_index_map),
            pl.BlockSpec((tile_r, _LANES), in_index_map),
        ],
        out_specs=tuple(out_specs),
        compiler_params=pltpu.CompilerParams(dimension_semantics=dims),
    )(x2, y2)


def psnr1d(x, y, data_range=None, *, tile_rows=None, split_cores=None):
    """Pallas TPU equivalent of PSNR1d.forward(x, y, data_range).

    tile_rows / split_cores are optional tuning/test overrides (None = auto).
    """
    assert x.ndim == 1 and y.ndim == 1, "x and y must be vectors"
    assert x.shape == y.shape
    n = x.shape[0]
    need_max = data_range is None

    # Bulk = largest prefix that is a whole number of (8,128) tiles (no padding,
    # no in-kernel masking for it); the <1024-element tail is reduced in JAX.
    bulk = (n // _CHUNK) * _CHUNK
    rem = n - bulk

    total_sq = jnp.float32(0.0)
    y_max = jnp.float32(-jnp.inf)

    if bulk:
        if rem == 0:
            xb, yb = x, y                           # zero-copy path (aligned N)
        else:
            # TODO(synk): ragged N still pays one HBM copy for this prefix slice;
            # a pl.ANY + manual-DMA path over the raw 1-D arrays would remove it.
            xb, yb = x[:bulk], y[:bulk]
        rows = bulk // _LANES                       # always a multiple of 8
        x2 = xb.reshape(rows, _LANES)               # native dtype; upcast in-kernel
        y2 = yb.reshape(rows, _LANES)
        outs = _reduce_bulk(x2, y2, rows, need_max,
                            tile_rows=tile_rows, split_cores=split_cores)
        total_sq = jnp.sum(outs[0])                 # one cross-lane reduce, in JAX
        if need_max:
            y_max = jnp.max(outs[1])

    if rem:
        xt = x[bulk:].astype(jnp.float32)
        yt = y[bulk:].astype(jnp.float32)
        total_sq = total_sq + jnp.sum((xt - yt) ** 2)
        if need_max:
            y_max = jnp.maximum(y_max, jnp.max(yt))

    mse = total_sq / jnp.float32(n)
    dr = y_max if need_max else jnp.asarray(data_range, jnp.float32)
    # Matches the reference module exactly: 10*log10(data_range / mse)
    # (NOT data_range**2 / mse; non-standard PSNR kept intentionally).
    return 10.0 * jnp.log10(dr / mse)


if __name__ == "__main__":
    key = jax.random.PRNGKey(0)
    kx, ky = jax.random.split(key)

    def ref_psnr(xr, yr, data_range=None):
        xf, yf = xr.astype(jnp.float32), yr.astype(jnp.float32)
        dr = jnp.max(yf) if data_range is None else jnp.float32(data_range)
        return 10.0 * jnp.log10(dr / jnp.mean((xf - yf) ** 2))

    checks = []

    # Aligned N, default path (data_range = y.max()) and explicit data_range.
    N = 1024
    x = jax.random.normal(kx, (N,), dtype=jnp.float32)
    y = jax.random.normal(ky, (N,), dtype=jnp.float32) + 1.0
    checks.append((psnr1d(x, y), ref_psnr(x, y)))
    checks.append((psnr1d(x, y, data_range=2.5), ref_psnr(x, y, 2.5)))

    # Ragged N below one chunk (tail-only JAX path).
    checks.append((psnr1d(x[:1000], y[:1000]), ref_psnr(x[:1000], y[:1000])))

    # Bulk + ragged tail; also bf16 inputs (narrow DMA, in-kernel upcast).
    N2 = 5 * 1024 + 37
    x2 = jax.random.normal(kx, (N2,), dtype=jnp.float32)
    y2 = jax.random.normal(ky, (N2,), dtype=jnp.float32) + 1.0
    checks.append((psnr1d(x2, y2), ref_psnr(x2, y2)))
    xb16, yb16 = x2.astype(jnp.bfloat16), y2.astype(jnp.bfloat16)
    checks.append((psnr1d(xb16, yb16), ref_psnr(xb16, yb16)))

    # Multi-tile reduction with a ragged last block (small tile override),
    # single-grid and forced 2-way core split (runs correctly on any chip).
    N3 = 9 * 1024
    x3 = jax.random.normal(kx, (N3,), dtype=jnp.float32)
    y3 = jax.random.normal(ky, (N3,), dtype=jnp.float32) + 0.5
    checks.append((psnr1d(x3, y3, tile_rows=16), ref_psnr(x3, y3)))
    checks.append((psnr1d(x3, y3, tile_rows=16, split_cores=2), ref_psnr(x3, y3)))

    for got, want in checks:
        got = jax.block_until_ready(got)
        want = jax.block_until_ready(want)
        assert jnp.allclose(got, want, rtol=2e-3, atol=2e-3), (got, want)

    print("KERNEL_OK")
</pallas_src>

<mosaic_0001>
module attributes {stable_mosaic.version = 11 : i64} {
  func.func @kernel(%arg0: i32, %arg1: memref<8x128xf32, #tpu.memory_space<vmem>>, %arg2: memref<8x128xf32, #tpu.memory_space<vmem>>, %arg3: memref<8x128xf32, #tpu.memory_space<vmem>>, %arg4: memref<8x128xf32, #tpu.memory_space<vmem>>) attributes {dimension_semantics = [#tpu.dimension_semantics<arbitrary>], iteration_bounds = array<i64: 1>, scalar_prefetch = 0 : i64, scratch_operands = 0 : i64, tpu.core_type = #tpu.core_type<tc>, window_params = [{transform_indices = @transform_0, window_bounds = array<i64: 8, 128>}, {transform_indices = @transform_1, window_bounds = array<i64: 8, 128>}, {pipeline_mode = #tpu.pipeline_mode<synchronous>, transform_indices = @transform_2, window_bounds = array<i64: 8, 128>}, {pipeline_mode = #tpu.pipeline_mode<synchronous>, transform_indices = @transform_3, window_bounds = array<i64: 8, 128>}]} {
    %c0_i32 = arith.constant 0 : i32
    %0 = arith.cmpi eq, %arg0, %c0_i32 : i32
    %1 = arith.extui %0 : i1 to i32
    %c0_i32_0 = arith.constant 0 : i32
    %2 = arith.cmpi ne, %1, %c0_i32_0 : i32
    scf.if %2 {
      %cst_13 = arith.constant 0.000000e+00 : f32
      %18 = vector.broadcast %cst_13 : f32 to vector<8x128xf32>
      %c0_14 = arith.constant 0 : index
      %c0_15 = arith.constant 0 : index
      %19 = vector.load %arg3[%c0_14, %c0_15] : memref<8x128xf32, #tpu.memory_space<vmem>>, vector<8x128xf32>
      tpu.vector_store %arg3[%c0_14, %c0_15], %18 {strides = array<i32>} : memref<8x128xf32, #tpu.memory_space<vmem>>, vector<8x128xf32>,
      %cst_16 = arith.constant 0xFF800000 : f32
      %20 = vector.broadcast %cst_16 : f32 to vector<8x128xf32>
      %c0_17 = arith.constant 0 : index
      %c0_18 = arith.constant 0 : index
      %21 = vector.load %arg4[%c0_17, %c0_18] : memref<8x128xf32, #tpu.memory_space<vmem>>, vector<8x128xf32>
      tpu.vector_store %arg4[%c0_17, %c0_18], %20 {strides = array<i32>} : memref<8x128xf32, #tpu.memory_space<vmem>>, vector<8x128xf32>,
    } else {
    }
    %c0 = arith.constant 0 : index
    %c0_1 = arith.constant 0 : index
    %3 = vector.load %arg1[%c0, %c0_1] : memref<8x128xf32, #tpu.memory_space<vmem>>, vector<8x128xf32>
    %c0_2 = arith.constant 0 : index
    %c0_3 = arith.constant 0 : index
    %4 = vector.load %arg2[%c0_2, %c0_3] : memref<8x128xf32, #tpu.memory_space<vmem>>, vector<8x128xf32>
    %5 = arith.subf %3, %4 : vector<8x128xf32>
    %6 = arith.subf %3, %4 : vector<8x128xf32>
    %7 = arith.mulf %5, %6 : vector<8x128xf32>
    %c0_4 = arith.constant 0 : index
    %c0_5 = arith.constant 0 : index
    %8 = vector.load %arg3[%c0_4, %c0_5] : memref<8x128xf32, #tpu.memory_space<vmem>>, vector<8x128xf32>
    %9 = vector.shape_cast %7 : vector<8x128xf32> to vector<1x8x128xf32>
    %cst = arith.constant dense<0.000000e+00> : vector<8x128xf32>
    %10 = vector.multi_reduction <add>, %9, %cst [0] : vector<1x8x128xf32> to vector<8x128xf32>
    %11 = arith.addf %8, %10 : vector<8x128xf32>
    %c0_6 = arith.constant 0 : index
    %c0_7 = arith.constant 0 : index
    %12 = vector.load %arg3[%c0_6, %c0_7] : memref<8x128xf32, #tpu.memory_space<vmem>>, vector<8x128xf32>
    tpu.vector_store %arg3[%c0_6, %c0_7], %11 {strides = array<i32>} : memref<8x128xf32, #tpu.memory_space<vmem>>, vector<8x128xf32>,
    %c0_8 = arith.constant 0 : index
    %c0_9 = arith.constant 0 : index
    %13 = vector.load %arg4[%c0_8, %c0_9] : memref<8x128xf32, #tpu.memory_space<vmem>>, vector<8x128xf32>
    %14 = vector.shape_cast %4 : vector<8x128xf32> to vector<1x8x128xf32>
    %cst_10 = arith.constant dense<0xFF800000> : vector<8x128xf32>
    %15 = vector.multi_reduction <maximumf>, %14, %cst_10 [0] : vector<1x8x128xf32> to vector<8x128xf32>
    %16 = arith.maximumf %13, %15 : vector<8x128xf32>
    %c0_11 = arith.constant 0 : index
    %c0_12 = arith.constant 0 : index
    %17 = vector.load %arg4[%c0_11, %c0_12] : memref<8x128xf32, #tpu.memory_space<vmem>>, vector<8x128xf32>
    tpu.vector_store %arg4[%c0_11, %c0_12], %16 {strides = array<i32>} : memref<8x128xf32, #tpu.memory_space<vmem>>, vector<8x128xf32>,
    return
  }
  func.func @transform_0(%arg0: i32) -> (i32, i32) {
    %c0_i32 = arith.constant 0 : i32
    %c0_i32_0 = arith.constant 0 : i32
    return %arg0, %c0_i32 : i32, i32
  }
  func.func @transform_1(%arg0: i32) -> (i32, i32) {
    %c0_i32 = arith.constant 0 : i32
    %c0_i32_0 = arith.constant 0 : i32
    return %arg0, %c0_i32 : i32, i32
  }
  func.func @transform_2(%arg0: i32) -> (i32, i32) {
    %c0_i32 = arith.constant 0 : i32
    %c0_i32_0 = arith.constant 0 : i32
    %c0_i32_1 = arith.constant 0 : i32
    return %c0_i32, %c0_i32_0 : i32, i32
  }
  func.func @transform_3(%arg0: i32) -> (i32, i32) {
    %c0_i32 = arith.constant 0 : i32
    %c0_i32_0 = arith.constant 0 : i32
    %c0_i32_1 = arith.constant 0 : i32
    return %c0_i32, %c0_i32_0 : i32, i32
  }
}

</mosaic_0001>

<llo_original>
// kernel: tpu_custom_call.1
$region0: #{tpu_custom_call.1}
  #allocation0 [shape = 'u32[]', space=smem, size = 0x4, offset = 0x4, fixed_abs, tag = 'smem constant byte address 0x4 - core index']
  #allocation1 [shape = 'u32[72,128]{1,0:T(1,128)}', space=vmem, size = 0x9000, scoped, tag = 'internal scratch']
  %s0 = inlined_call_operand.hbm [shape: f32[8,128], index: 0, kind: input, shape index: {}]
  %s1 = inlined_call_operand.hbm [shape: f32[8,128], index: 1, kind: input, shape index: {}]
  %s2 = inlined_call_operand.hbm [shape: f32[8,128], index: 2, kind: output, shape index: {0}]
  %s3 = inlined_call_operand.hbm [shape: f32[8,128], index: 3, kind: output, shape index: {1}]
  %4 = xla_tuple %s2, %s3
  %s5 = sld [smem:[#allocation0]]
  $region38: #{tpu_custom_call.1} parent=0
    _
  %s7 = ssub.s32 1, %s5
  %s8 = scalar_select 0, %s7, %s5
  $region1: #{tpu_custom_call.1} parent=0
    #allocation2 [shape = 'u8[4096]{0}', space=vmem, size = 0x1000, scoped, tag = 'input window, operand 0, single buffered']
    #allocation3 [shape = 's32[1]{0}', space=sflag, size = 0x4, scoped, tag = 'scoped memory for tpu_custom_call.1']
    #allocation4 [shape = 's32[1]{0}', space=sflag, size = 0x4, scoped, tag = 'scoped memory for tpu_custom_call.1']
    #allocation5 [shape = 'u8[4096]{0}', space=vmem, size = 0x1000, scoped, tag = 'input window, operand 1, single buffered']
    #allocation6 [shape = 's32[1]{0}', space=sflag, size = 0x4, scoped, tag = 'scoped memory for tpu_custom_call.1']
    #allocation7 [shape = 'u8[4096]{0}', space=vmem, size = 0x1000, scoped, tag = 'output window, operand 0, single buffered']
    #allocation8 [shape = 'u8[4096]{0}', space=vmem, size = 0x1000, scoped, tag = 'output window, operand 1, single buffered']
    #allocation9 [shape = 's32[1]{0}', space=sflag, size = 0x4, scoped, tag = 'scoped memory for tpu_custom_call.1']
    %9 = vsyncpa [#allocation3], 0
    %10 = vsyncpa [#allocation6], 0
    %11 = vsyncpa [#allocation4], 0
    %12 = vsyncpa [#allocation9], 0
    // Predicated region
    $region2: #{tpu_custom_call.1} parent=1 // pred_check
      _
    $region3: #{tpu_custom_call.1} parent=1 // pred_check_branch
      %14 = sbr.rel (0) target = $region5
    $region4: #{tpu_custom_call.1} parent=1 // pred_region
      %16 = vsyncadd [#allocation3], 0
      %s18 = sshll.u32 %s0, 4
      %s19 = int_to_ptr.hbm [resolvable:$true] %s18
      %s20 = sshll.u32 [#allocation2], 4
      %s21 = int_to_ptr.vmem [resolvable:$true] %s20
      %23 = dma.hbm_to_vmem [thread:$0]  %s19, 128, %s21, [#allocation3]
    $region5: #{tpu_custom_call.1} parent=1 // pred_fallthru
      _
    // Predicated region
    $region6: #{tpu_custom_call.1} parent=1 // pred_check
      _
    $region7: #{tpu_custom_call.1} parent=1 // pred_check_branch
      %25 = sbr.rel (0) target = $region9
    $region8: #{tpu_custom_call.1} parent=1 // pred_region
      %27 = vsyncadd [#allocation6], 0
      %s29 = sshll.u32 %s1, 4
      %s30 = int_to_ptr.hbm [resolvable:$true] %s29
      %s31 = sshll.u32 [#allocation5], 4
      %s32 = int_to_ptr.vmem [resolvable:$true] %s31
      %34 = dma.hbm_to_vmem [thread:$0]  %s30, 128, %s32, [#allocation6]
    $region9: #{tpu_custom_call.1} parent=1 // pred_fallthru
      _
    // Predicated region
    $region10: #{tpu_custom_call.1} parent=1 // pred_check
      _
    $region11: #{tpu_custom_call.1} parent=1 // pred_check_branch
      %36 = sbr.rel (0) target = $region13
    $region12: #{tpu_custom_call.1} parent=1 // pred_region
      %38 = dma.done [#allocation3], 128
    $region13: #{tpu_custom_call.1} parent=1 // pred_fallthru
      _
    // Predicated region
    $region14: #{tpu_custom_call.1} parent=1 // pred_check
      _
    $region15: #{tpu_custom_call.1} parent=1 // pred_check_branch
      %40 = sbr.rel (0) target = $region17
    $region16: #{tpu_custom_call.1} parent=1 // pred_region
      %42 = dma.done [#allocation6], 128
    $region17: #{tpu_custom_call.1} parent=1 // pred_fallthru
      _
    %p43 = scmp.eq.s32.totalorder 0, 0
    // Predicated region
    $region18: #{tpu_custom_call.1} parent=1 // pred_check
      %p44 = pneg %p43
    $region19: #{tpu_custom_call.1} parent=1 // pred_check_branch
      %46 = sbr.rel (%p44) target = $region21
    $region20: #{tpu_custom_call.1} parent=1 // pred_region
      %47 = vst [vmem:[#allocation7] sm:$0xff] 0.0
      %48 = vst [vmem:[#allocation8] sm:$0xff] -inf
    $region21: #{tpu_custom_call.1} parent=1 // pred_fallthru
      _
    %v49 = vld [vmem:[#allocation2] sm:$0xff]
    %v50 = vld [vmem:[#allocation5] sm:$0xff]
    %v51 = vsub.f32 %v49, %v50
    %v52 = vmul.f32 %v51, %v51
    %v53 = vld [vmem:[#allocation7] sm:$0xff]
    %v54 = vadd.f32 %v52, 0.0
    %v55 = vadd.f32 %v53, %v54
    %56 = vst [vmem:[#allocation7] sm:$0xff] %v55
    %v57 = vld [vmem:[#allocation8] sm:$0xff]
    %v58 = vmax.f32 %v57, %v50
    %59 = vst [vmem:[#allocation8] sm:$0xff] %v58
    // Predicated region
    $region22: #{tpu_custom_call.1} parent=1 // pred_check
      _
    $region23: #{tpu_custom_call.1} parent=1 // pred_check_branch
      %61 = sbr.rel (0) target = $region25
    $region24: #{tpu_custom_call.1} parent=1 // pred_region
      %63 = vsyncadd [#allocation4], 0
      %s65 = sshll.u32 [#allocation7], 4
      %s66 = int_to_ptr.vmem [resolvable:$true] %s65
      %s67 = sshll.u32 %s2, 4
      %s68 = int_to_ptr.hbm [resolvable:$true] %s67
      %70 = dma.vmem_to_hbm [thread:$0]  %s66, 128, %s68, [#allocation4]
    $region25: #{tpu_custom_call.1} parent=1 // pred_fallthru
      _
    // Predicated region
    $region26: #{tpu_custom_call.1} parent=1 // pred_check
      _
    $region27: #{tpu_custom_call.1} parent=1 // pred_check_branch
      %72 = sbr.rel (0) target = $region29
    $region28: #{tpu_custom_call.1} parent=1 // pred_region
      %74 = vsyncadd [#allocation9], 0
      %s76 = sshll.u32 [#allocation8], 4
      %s77 = int_to_ptr.vmem [resolvable:$true] %s76
      %s78 = sshll.u32 %s3, 4
      %s79 = int_to_ptr.hbm [resolvable:$true] %s78
      %81 = dma.vmem_to_hbm [thread:$0]  %s77, 128, %s79, [#allocation9]
    $region29: #{tpu_custom_call.1} parent=1 // pred_fallthru
      _
    // Predicated region
    $region30: #{tpu_custom_call.1} parent=1 // pred_check
      _
    $region31: #{tpu_custom_call.1} parent=1 // pred_check_branch
      %83 = sbr.rel (0) target = $region33
    $region32: #{tpu_custom_call.1} parent=1 // pred_region
      %85 = dma.done [#allocation4], 128
    $region33: #{tpu_custom_call.1} parent=1 // pred_fallthru
      _
    // Predicated region
    $region34: #{tpu_custom_call.1} parent=1 // pred_check
      _
    $region35: #{tpu_custom_call.1} parent=1 // pred_check_branch
      %87 = sbr.rel (0) target = $region37
    $region36: #{tpu_custom_call.1} parent=1 // pred_region
      %89 = dma.done [#allocation9], 128
    $region37: #{tpu_custom_call.1} parent=1 // pred_fallthru
      _
    %90 = vsyncpa [#allocation3], 1
    %91 = vsyncpa [#allocation6], 1
    %92 = vsyncpa [#allocation4], 1
    %93 = vsyncpa [#allocation9], 1

</llo_original>
